<compile_context>
chip_gen: v7x
topology: tpu7x:2x2x1
jax: 0.10.0
libtpu: 0.0.40
codegen_flags: <defaults>
</compile_context>

<pallas_src>
import functools

import jax
import jax.numpy as jnp
from jax import lax
from jax.experimental import pallas as pl
from jax.experimental.pallas import tpu as pltpu

EPS = 1e-5
VMEM_LIMIT = 32 * 1024 * 1024   # safe on v5e/v6e (128 MiB) and v7x (64 MiB)


def _round_up(x, m):
    return ((x + m - 1) // m) * m


def _cdiv(a, b):
    return (a + b - 1) // b


# ---------------------------------------------------------------------------
# In-kernel patch assembly: two adjacent lane blocks -> 9 static tap slices
# ---------------------------------------------------------------------------
def _assemble_patch(xa_ref, xb_ref, tap_offs, tm):
    win = jnp.concatenate([xa_ref[...], xb_ref[...]], axis=1)       # (Cin, 2*TM)
    winf = win.astype(jnp.float32)
    taps = [winf[:, o:o + tm] for o in tap_offs]                    # static slices
    return jnp.concatenate(taps, axis=0).astype(jnp.bfloat16)       # (9*Cin, TM)


# ---------------------------------------------------------------------------
# Kernel 1: recompute-GEMM + masked BN partial statistics (no y writeback)
# ---------------------------------------------------------------------------
def stats_kernel(xa_ref, xb_ref, w_ref, msk_ref, st_ref, *, tap_offs, tm):
    patch = _assemble_patch(xa_ref, xb_ref, tap_offs, tm)            # (K, TM) bf16
    y = jnp.dot(w_ref[...], patch, preferred_element_type=jnp.float32)  # (R, TM)
    valid = msk_ref[0:1, :].astype(jnp.float32)                      # (1, TM)
    ym = y * valid                                                   # mask padded lanes
    s1 = jnp.sum(ym, axis=1, keepdims=True)                          # (R, 1)
    s2 = jnp.sum(ym * ym, axis=1, keepdims=True)                     # (R, 1)
    st_ref[0] = jnp.concatenate([s1, s2], axis=1)                    # (R, 2)


# ---------------------------------------------------------------------------
# Kernel 2: recompute-GEMM + BN affine + ReLU + shortcut (value/bias/border)
# ---------------------------------------------------------------------------
def out_kernel(xa_ref, xb_ref, w_ref, msk_ref, prm_ref, o_ref, *, tap_offs, tm, cp):
    patch = _assemble_patch(xa_ref, xb_ref, tap_offs, tm)
    y = jnp.dot(w_ref[...], patch, preferred_element_type=jnp.float32)  # (5*Cp, TM)
    ymain = y[:4 * cp]                 # 4 sub-pixel phases, channel-major rows
    yshort = y[4 * cp:]                # folded 1x1 shortcut conv (phase (1,1))

    scale = prm_ref[:, 0:1]            # (Cp, 1)
    shift = prm_ref[:, 1:2]
    sbias = prm_ref[:, 2:3]
    scale4 = jnp.concatenate([scale] * 4, axis=0)
    shift4 = jnp.concatenate([shift] * 4, axis=0)
    z = jnp.maximum(ymain * scale4 + shift4, 0.0)                    # BN + ReLU

    int_h = msk_ref[1:2, :].astype(jnp.float32)   # qh >= 1 (not top border)
    int_w = msk_ref[2:3, :].astype(jnp.float32)   # qw >= 1 (not left border)
    res = [
        sbias * (int_h * int_w),       # phase (0,0): bias except top/left border
        sbias * int_h,                 # phase (0,1): bias except top border
        sbias * int_w,                 # phase (1,0): bias except left border
        sbias + yshort,                # phase (1,1): shortcut conv value + bias
    ]
    o_ref[...] = (z + jnp.concatenate(res, axis=0)).astype(o_ref.dtype)


# ---------------------------------------------------------------------------
# ResidualBlock forward
# ---------------------------------------------------------------------------
def residual_block_forward(x_nchw, params, *, kernel_size, stride, padding,
                           output_padding=0, pad=True, eps=EPS):
    assert pad and output_padding == 0, \
        "implemented for the pad=True / output_padding=0 configuration"
    kh, kw = kernel_size
    sh, sw = stride
    ph, pw = padding
    assert (sh, sw) == (2, 2), "shortcut ConvTranspose2d hard-codes stride (2,2)"
    assert kh == sh + 2 * ph and kw == sw + 2 * pw, \
        "supported: kernel = stride + 2*padding (each phase spans exactly HxW)"
    assert ph <= 2 and pw <= 2, "tap neighborhood limited to +/-1"

    w_main = params["dconv_w"]                       # (Cin, Cout, kh, kw)
    gamma, beta = params["bn_gamma"], params["bn_beta"]
    w_short, b_short = params["s_w"], params["s_b"]

    N, Cin, H, W = x_nchw.shape
    Cout = w_main.shape[1]
    Hp, Wp = H + 2, W + 2
    OFF = Wp + 1                                     # halo margin (first valid center)
    L = N * Hp * Wp
    Cp = _round_up(Cout, 8)
    R = 5 * Cp                                       # 4 phases + folded shortcut
    K = 9 * Cin

    # Lane tile: multiple of 128, >= halo window, aim for >= 4 grid steps (v7x).
    tm = min(512, max(128, 128 * (L // (4 * 128))))
    tm = max(tm, 128 * _cdiv(2 * OFF, 128))
    nM = _cdiv(L, tm)
    slots = nM * tm
    Lp = (nM + 1) * tm                               # +1 block so the halo read exists

    # --- single padded, channel-major, flattened bf16 input (one small pass) ---
    x_cm = jnp.transpose(x_nchw.astype(jnp.float32), (1, 0, 2, 3))   # (Cin,N,H,W)
    xpad = jnp.pad(x_cm, ((0, 0), (0, 0), (1, 1), (1, 1)))           # (Cin,N,Hp,Wp)
    xq = jnp.zeros((Cin, Lp), jnp.bfloat16).at[:, :L].set(
        xpad.reshape(Cin, L).astype(jnp.bfloat16))

    # --- precomputed per-lane masks (no integer div/mod inside the kernels) ---
    c = jnp.arange(slots, dtype=jnp.int32) + OFF
    wp_ = c % Wp
    hp_ = (c // Wp) % Hp
    n_ = c // (Hp * Wp)
    valid = (wp_ >= 1) & (wp_ <= W) & (hp_ >= 1) & (hp_ <= H) & (n_ < N)
    msk = jnp.stack([valid, hp_ > 1, wp_ > 1, jnp.zeros_like(valid)],
                    axis=0).astype(jnp.bfloat16)                     # (4, slots)

    # --- fused weight: 4 sub-pixel phases of the dconv + folded 1x1 shortcut ---
    taps = [(dh, dw) for dh in (-1, 0, 1) for dw in (-1, 0, 1)]
    tap_offs = tuple(OFF + dh * Wp + dw for (dh, dw) in taps)
    Wb = jnp.zeros((R, K), jnp.float32)
    for p in range(4):
        rh, rw = p // 2, p % 2
        for t, (dh, dw) in enumerate(taps):
            ki = rh + ph - sh * dh
            kj = rw + pw - sw * dw
            if 0 <= ki < kh and 0 <= kj < kw:
                Wb = Wb.at[p * Cp:p * Cp + Cout,
                           t * Cin:(t + 1) * Cin].set(w_main[:, :, ki, kj].T)
    t00 = taps.index((0, 0))
    Wb = Wb.at[4 * Cp:4 * Cp + Cout,
               t00 * Cin:(t00 + 1) * Cin].set(w_short[:, :, 0, 0].T)
    Wb = Wb.astype(jnp.bfloat16)
    # NOTE: the dconv bias is mathematically cancelled by the training-mode
    # BatchNorm batch-mean subtraction, so it is skipped entirely.

    grid = (nM,)
    xa_spec = pl.BlockSpec((Cin, tm), lambda i: (0, i))
    xb_spec = pl.BlockSpec((Cin, tm), lambda i: (0, i + 1))      # halo block
    w_spec = pl.BlockSpec((R, K), lambda i: (0, 0))              # fetched once
    msk_spec = pl.BlockSpec((4, tm), lambda i: (0, i))
    cparams = pltpu.CompilerParams(dimension_semantics=("parallel",),
                                   vmem_limit_bytes=VMEM_LIMIT)

    # ---- kernel 1: masked BN partial statistics (no y writeback) ----
    stats = pl.pallas_call(
        functools.partial(stats_kernel, tap_offs=tap_offs, tm=tm),
        out_shape=jax.ShapeDtypeStruct((nM, R, 2), jnp.float32),
        grid_spec=pltpu.PrefetchScalarGridSpec(
            num_scalar_prefetch=0, grid=grid,
            in_specs=[xa_spec, xb_spec, w_spec, msk_spec],
            out_specs=pl.BlockSpec((1, R, 2), lambda i: (i, 0, 0))),
        compiler_params=cparams,
    )(xq, xq, Wb, msk)

    # Tiny JAX glue: combine partial sums -> BN scale/shift (biased var, torch).
    tot = jnp.sum(stats, axis=0)                          # (R, 2)
    main = tot[:4 * Cp].reshape(4, Cp, 2)
    cnt = jnp.float32(N * (sh * H) * (sw * W))
    mean = jnp.sum(main[:, :, 0], axis=0) / cnt
    var = jnp.maximum(jnp.sum(main[:, :, 1], axis=0) / cnt - mean * mean, 0.0)
    gamma_p = jnp.zeros((Cp,), jnp.float32).at[:Cout].set(gamma)
    beta_p = jnp.zeros((Cp,), jnp.float32).at[:Cout].set(beta)
    sbias_p = jnp.zeros((Cp,), jnp.float32).at[:Cout].set(b_short)
    scale = gamma_p / jnp.sqrt(var + eps)
    shift = beta_p - mean * scale
    prm = jnp.stack([scale, shift, sbias_p, jnp.zeros_like(scale)], axis=1)  # (Cp,4)

    # ---- kernel 2: recompute conv + BN affine + ReLU + shortcut, bf16 out ----
    out_pm = pl.pallas_call(
        functools.partial(out_kernel, tap_offs=tap_offs, tm=tm, cp=Cp),
        out_shape=jax.ShapeDtypeStruct((4 * Cp, slots), jnp.bfloat16),
        grid_spec=pltpu.PrefetchScalarGridSpec(
            num_scalar_prefetch=0, grid=grid,
            in_specs=[xa_spec, xb_spec, w_spec, msk_spec,
                      pl.BlockSpec((Cp, 4), lambda i: (0, 0))],
            out_specs=pl.BlockSpec((4 * Cp, tm), lambda i: (0, i))),
        compiler_params=cparams,
    )(xq, xq, Wb, msk, prm)

    # ---- de-interleave sub-pixel phases (single XLA pass over bf16 data) ----
    # TODO(synk): interleave the rw=0/rw=1 phase pair in-kernel (XLU roll) so
    # only the cheap H interleave remains here.
    o4 = out_pm.reshape(4, Cp, slots)[:, :Cout, :]
    o4 = jnp.pad(o4, ((0, 0), (0, 0), (OFF, max(0, L - OFF - slots))))[:, :, :L]
    o6 = o4.reshape(2, 2, Cout, N, Hp, Wp)[:, :, :, :, 1:H + 1, 1:W + 1]
    out = jnp.transpose(o6, (3, 2, 4, 0, 5, 1)).reshape(N, Cout, sh * H, sw * W)
    return out.astype(jnp.float32)


# ---------------------------------------------------------------------------
# Pure-JAX reference (structural correctness check)
# ---------------------------------------------------------------------------
def convtranspose2d_ref(x, w, b, stride, padding, output_padding=0):
    kh, kw = w.shape[2], w.shape[3]
    ph, pw = padding
    w_flip = jnp.transpose(w, (1, 0, 2, 3))[:, :, ::-1, ::-1]   # OIHW, flipped
    y = lax.conv_general_dilated(
        x, w_flip, window_strides=(1, 1),
        padding=[(kh - 1 - ph, kh - 1 - ph + output_padding),
                 (kw - 1 - pw, kw - 1 - pw + output_padding)],
        lhs_dilation=stride,
        dimension_numbers=("NCHW", "OIHW", "NCHW"))
    return y + b[None, :, None, None] if b is not None else y


def residual_block_ref(x, params, *, kernel_size, stride, padding,
                       output_padding=0, pad=True, eps=EPS):
    y = convtranspose2d_ref(x, params["dconv_w"], params["dconv_b"], stride, padding)
    mean = jnp.mean(y, axis=(0, 2, 3), keepdims=True)
    var = jnp.mean((y - mean) ** 2, axis=(0, 2, 3), keepdims=True)   # biased
    y = (y - mean) / jnp.sqrt(var + eps)
    y = y * params["bn_gamma"][None, :, None, None] + params["bn_beta"][None, :, None, None]
    y = jnp.maximum(y, 0.0)
    s = convtranspose2d_ref(x, params["s_w"], params["s_b"], (2, 2), (0, 0),
                            output_padding=output_padding)
    if pad:
        dh, dw = y.shape[2] - s.shape[2], y.shape[3] - s.shape[3]
        s = jnp.pad(s, ((0, 0), (0, 0), (dh, 0), (dw, 0)))
    return y + s


if __name__ == "__main__":
    key = jax.random.PRNGKey(0)
    kx, k1, k2, k3, k4, k5, k6 = jax.random.split(key, 7)

    N, Cin, Cout, H, W = 2, 4, 8, 16, 16
    kernel_size, stride, padding = (4, 4), (2, 2), (1, 1)

    x = jax.random.normal(kx, (N, Cin, H, W), jnp.float32)
    params = {
        "dconv_w": 0.2 * jax.random.normal(k1, (Cin, Cout, *kernel_size), jnp.float32),
        "dconv_b": 0.2 * jax.random.normal(k2, (Cout,), jnp.float32),
        "bn_gamma": 1.0 + 0.1 * jax.random.normal(k3, (Cout,), jnp.float32),
        "bn_beta": 0.1 * jax.random.normal(k4, (Cout,), jnp.float32),
        "s_w": 0.2 * jax.random.normal(k5, (Cin, Cout, 1, 1), jnp.float32),
        "s_b": 0.2 * jax.random.normal(k6, (Cout,), jnp.float32),
    }

    fwd = jax.jit(functools.partial(
        residual_block_forward, kernel_size=kernel_size, stride=stride,
        padding=padding, output_padding=0, pad=True))
    out = jax.block_until_ready(fwd(x, params))

    assert out.shape == (N, Cout, 2 * H, 2 * W), out.shape
    assert bool(jnp.all(jnp.isfinite(out)))

    ref = residual_block_ref(x, params, kernel_size=kernel_size, stride=stride,
                             padding=padding, output_padding=0, pad=True)
    max_err = float(jnp.max(jnp.abs(out - ref)))
    assert bool(jnp.allclose(out, ref, atol=1e-1, rtol=1e-1)), max_err
    print("KERNEL_OK")
</pallas_src>

<mosaic_0001>
module attributes {stable_mosaic.version = 11 : i64} {
  func.func @stats_kernel(%arg0: i32, %arg1: memref<4x128xbf16, #tpu.memory_space<vmem>>, %arg2: memref<4x128xbf16, #tpu.memory_space<vmem>>, %arg3: memref<40x36xbf16, #tpu.memory_space<vmem>>, %arg4: memref<4x128xbf16, #tpu.memory_space<vmem>>, %arg5: memref<1x40x2xf32, #tpu.memory_space<vmem>>) attributes {dimension_semantics = [#tpu.dimension_semantics<parallel>], iteration_bounds = array<i64: 6>, scalar_prefetch = 0 : i64, scratch_operands = 0 : i64, tpu.core_type = #tpu.core_type<tc>, window_params = [{transform_indices = @transform_0, window_bounds = array<i64: 4, 128>}, {transform_indices = @transform_1, window_bounds = array<i64: 4, 128>}, {pipeline_mode = #tpu.pipeline_mode<synchronous>, transform_indices = @transform_2, window_bounds = array<i64: 40, 36>}, {transform_indices = @transform_3, window_bounds = array<i64: 4, 128>}, {transform_indices = @transform_4, window_bounds = array<i64: 1, 40, 2>}]} {
    %c0 = arith.constant 0 : index
    %c0_0 = arith.constant 0 : index
    %0 = vector.load %arg1[%c0, %c0_0] : memref<4x128xbf16, #tpu.memory_space<vmem>>, vector<4x128xbf16>
    %c0_1 = arith.constant 0 : index
    %c0_2 = arith.constant 0 : index
    %1 = vector.load %arg2[%c0_1, %c0_2] : memref<4x128xbf16, #tpu.memory_space<vmem>>, vector<4x128xbf16>
    %2 = tpu.concatenate %0, %1 in 1 : vector<4x128xbf16>, vector<4x128xbf16> -> vector<4x256xbf16>
    %3 = arith.extf %2 : vector<4x256xbf16> to vector<4x256xf32>
    %4 = vector.extract_strided_slice %3 {offsets = [0, 0], sizes = [4, 128], strides = [1, 1]} : vector<4x256xf32> to vector<4x128xf32>
    %5 = vector.extract_strided_slice %3 {offsets = [0, 1], sizes = [4, 128], strides = [1, 1]} : vector<4x256xf32> to vector<4x128xf32>
    %6 = vector.extract_strided_slice %3 {offsets = [0, 2], sizes = [4, 128], strides = [1, 1]} : vector<4x256xf32> to vector<4x128xf32>
    %7 = vector.extract_strided_slice %3 {offsets = [0, 18], sizes = [4, 128], strides = [1, 1]} : vector<4x256xf32> to vector<4x128xf32>
    %8 = vector.extract_strided_slice %3 {offsets = [0, 19], sizes = [4, 128], strides = [1, 1]} : vector<4x256xf32> to vector<4x128xf32>
    %9 = vector.extract_strided_slice %3 {offsets = [0, 20], sizes = [4, 128], strides = [1, 1]} : vector<4x256xf32> to vector<4x128xf32>
    %10 = vector.extract_strided_slice %3 {offsets = [0, 36], sizes = [4, 128], strides = [1, 1]} : vector<4x256xf32> to vector<4x128xf32>
    %11 = vector.extract_strided_slice %3 {offsets = [0, 37], sizes = [4, 128], strides = [1, 1]} : vector<4x256xf32> to vector<4x128xf32>
    %12 = vector.extract_strided_slice %3 {offsets = [0, 38], sizes = [4, 128], strides = [1, 1]} : vector<4x256xf32> to vector<4x128xf32>
    %13 = tpu.concatenate %4, %5, %6, %7, %8, %9, %10, %11, %12 in 0 : vector<4x128xf32>, vector<4x128xf32>, vector<4x128xf32>, vector<4x128xf32>, vector<4x128xf32>, vector<4x128xf32>, vector<4x128xf32>, vector<4x128xf32>, vector<4x128xf32> -> vector<36x128xf32>
    %14 = arith.truncf %13 : vector<36x128xf32> to vector<36x128xbf16>
    %c0_3 = arith.constant 0 : index
    %c0_4 = arith.constant 0 : index
    %15 = vector.load %arg3[%c0_3, %c0_4] : memref<40x36xbf16, #tpu.memory_space<vmem>>, vector<40x36xbf16>
    %cst = arith.constant dense<0.000000e+00> : vector<40x128xf32>
    %16 = tpu.matmul %15, %14, %cst {dimension_numbers = #tpu.dot_dimension_numbers<[1], [0], [0], [1], [0, 0, 1, 1], [], []>} : vector<40x36xbf16>, vector<36x128xbf16>, vector<40x128xf32> -> vector<40x128xf32>
    %c0_5 = arith.constant 0 : index
    %c0_6 = arith.constant 0 : index
    %17 = vector.load %arg4[%c0_5, %c0_6] : memref<4x128xbf16, #tpu.memory_space<vmem>>, vector<1x128xbf16>
    %18 = arith.extf %17 : vector<1x128xbf16> to vector<1x128xf32>
    %19 = vector.broadcast %18 : vector<1x128xf32> to vector<40x128xf32>
    %20 = arith.mulf %16, %19 : vector<40x128xf32>
    %cst_7 = arith.constant dense<0.000000e+00> : vector<40xf32>
    %21 = vector.multi_reduction <add>, %20, %cst_7 [1] : vector<40x128xf32> to vector<40xf32>
    %22 = vector.shape_cast %21 : vector<40xf32> to vector<40x1xf32>
    %23 = arith.mulf %20, %20 : vector<40x128xf32>
    %cst_8 = arith.constant dense<0.000000e+00> : vector<40xf32>
    %24 = vector.multi_reduction <add>, %23, %cst_8 [1] : vector<40x128xf32> to vector<40xf32>
    %25 = vector.shape_cast %24 : vector<40xf32> to vector<40x1xf32>
    %26 = tpu.concatenate %22, %25 in 1 : vector<40x1xf32>, vector<40x1xf32> -> vector<40x2xf32>
    %c0_9 = arith.constant 0 : index
    %c0_10 = arith.constant 0 : index
    %c0_11 = arith.constant 0 : index
    %27 = vector.load %arg5[%c0_9, %c0_10, %c0_11] : memref<1x40x2xf32, #tpu.memory_space<vmem>>, vector<1x40x2xf32>
    %28 = vector.shape_cast %27 : vector<1x40x2xf32> to vector<40x2xf32>
    %29 = vector.shape_cast %26 : vector<40x2xf32> to vector<1x40x2xf32>
    tpu.vector_store %arg5[%c0_9, %c0_10, %c0_11], %29 {strides = array<i32>} : memref<1x40x2xf32, #tpu.memory_space<vmem>>, vector<1x40x2xf32>,
    return
  }
  func.func @transform_0(%arg0: i32) -> (i32, i32) {
    %c0_i32 = arith.constant 0 : i32
    %c0_i32_0 = arith.constant 0 : i32
    return %c0_i32, %arg0 : i32, i32
  }
  func.func @transform_1(%arg0: i32) -> (i32, i32) {
    %c1_i32 = arith.constant 1 : i32
    %0 = arith.addi %arg0, %c1_i32 : i32
    %c0_i32 = arith.constant 0 : i32
    %c0_i32_0 = arith.constant 0 : i32
    return %c0_i32, %0 : i32, i32
  }
  func.func @transform_2(%arg0: i32) -> (i32, i32) {
    %c0_i32 = arith.constant 0 : i32
    %c0_i32_0 = arith.constant 0 : i32
    %c0_i32_1 = arith.constant 0 : i32
    return %c0_i32, %c0_i32_0 : i32, i32
  }
  func.func @transform_3(%arg0: i32) -> (i32, i32) {
    %c0_i32 = arith.constant 0 : i32
    %c0_i32_0 = arith.constant 0 : i32
    return %c0_i32, %arg0 : i32, i32
  }
  func.func @transform_4(%arg0: i32) -> (i32, i32, i32) {
    %c0_i32 = arith.constant 0 : i32
    %c0_i32_0 = arith.constant 0 : i32
    %c0_i32_1 = arith.constant 0 : i32
    return %arg0, %c0_i32, %c0_i32_0 : i32, i32, i32
  }
}

module attributes {stable_mosaic.version = 11 : i64} {
  func.func @out_kernel(%arg0: i32, %arg1: memref<4x128xbf16, #tpu.memory_space<vmem>>, %arg2: memref<4x128xbf16, #tpu.memory_space<vmem>>, %arg3: memref<40x36xbf16, #tpu.memory_space<vmem>>, %arg4: memref<4x128xbf16, #tpu.memory_space<vmem>>, %arg5: memref<8x4xf32, #tpu.memory_space<vmem>>, %arg6: memref<32x128xbf16, #tpu.memory_space<vmem>>) attributes {dimension_semantics = [#tpu.dimension_semantics<parallel>], iteration_bounds = array<i64: 6>, scalar_prefetch = 0 : i64, scratch_operands = 0 : i64, tpu.core_type = #tpu.core_type<tc>, window_params = [{transform_indices = @transform_0, window_bounds = array<i64: 4, 128>}, {transform_indices = @transform_1, window_bounds = array<i64: 4, 128>}, {pipeline_mode = #tpu.pipeline_mode<synchronous>, transform_indices = @transform_2, window_bounds = array<i64: 40, 36>}, {transform_indices = @transform_3, window_bounds = array<i64: 4, 128>}, {pipeline_mode = #tpu.pipeline_mode<synchronous>, transform_indices = @transform_4, window_bounds = array<i64: 8, 4>}, {transform_indices = @transform_5, window_bounds = array<i64: 32, 128>}]} {
    %c0 = arith.constant 0 : index
    %c0_0 = arith.constant 0 : index
    %0 = vector.load %arg1[%c0, %c0_0] : memref<4x128xbf16, #tpu.memory_space<vmem>>, vector<4x128xbf16>
    %c0_1 = arith.constant 0 : index
    %c0_2 = arith.constant 0 : index
    %1 = vector.load %arg2[%c0_1, %c0_2] : memref<4x128xbf16, #tpu.memory_space<vmem>>, vector<4x128xbf16>
    %2 = tpu.concatenate %0, %1 in 1 : vector<4x128xbf16>, vector<4x128xbf16> -> vector<4x256xbf16>
    %3 = arith.extf %2 : vector<4x256xbf16> to vector<4x256xf32>
    %4 = vector.extract_strided_slice %3 {offsets = [0, 0], sizes = [4, 128], strides = [1, 1]} : vector<4x256xf32> to vector<4x128xf32>
    %5 = vector.extract_strided_slice %3 {offsets = [0, 1], sizes = [4, 128], strides = [1, 1]} : vector<4x256xf32> to vector<4x128xf32>
    %6 = vector.extract_strided_slice %3 {offsets = [0, 2], sizes = [4, 128], strides = [1, 1]} : vector<4x256xf32> to vector<4x128xf32>
    %7 = vector.extract_strided_slice %3 {offsets = [0, 18], sizes = [4, 128], strides = [1, 1]} : vector<4x256xf32> to vector<4x128xf32>
    %8 = vector.extract_strided_slice %3 {offsets = [0, 19], sizes = [4, 128], strides = [1, 1]} : vector<4x256xf32> to vector<4x128xf32>
    %9 = vector.extract_strided_slice %3 {offsets = [0, 20], sizes = [4, 128], strides = [1, 1]} : vector<4x256xf32> to vector<4x128xf32>
    %10 = vector.extract_strided_slice %3 {offsets = [0, 36], sizes = [4, 128], strides = [1, 1]} : vector<4x256xf32> to vector<4x128xf32>
    %11 = vector.extract_strided_slice %3 {offsets = [0, 37], sizes = [4, 128], strides = [1, 1]} : vector<4x256xf32> to vector<4x128xf32>
    %12 = vector.extract_strided_slice %3 {offsets = [0, 38], sizes = [4, 128], strides = [1, 1]} : vector<4x256xf32> to vector<4x128xf32>
    %13 = tpu.concatenate %4, %5, %6, %7, %8, %9, %10, %11, %12 in 0 : vector<4x128xf32>, vector<4x128xf32>, vector<4x128xf32>, vector<4x128xf32>, vector<4x128xf32>, vector<4x128xf32>, vector<4x128xf32>, vector<4x128xf32>, vector<4x128xf32> -> vector<36x128xf32>
    %14 = arith.truncf %13 : vector<36x128xf32> to vector<36x128xbf16>
    %c0_3 = arith.constant 0 : index
    %c0_4 = arith.constant 0 : index
    %15 = vector.load %arg3[%c0_3, %c0_4] : memref<40x36xbf16, #tpu.memory_space<vmem>>, vector<40x36xbf16>
    %cst = arith.constant dense<0.000000e+00> : vector<40x128xf32>
    %16 = tpu.matmul %15, %14, %cst {dimension_numbers = #tpu.dot_dimension_numbers<[1], [0], [0], [1], [0, 0, 1, 1], [], []>} : vector<40x36xbf16>, vector<36x128xbf16>, vector<40x128xf32> -> vector<40x128xf32>
    %17 = vector.extract_strided_slice %16 {offsets = [0, 0], sizes = [32, 128], strides = [1, 1]} : vector<40x128xf32> to vector<32x128xf32>
    %18 = vector.extract_strided_slice %16 {offsets = [32, 0], sizes = [8, 128], strides = [1, 1]} : vector<40x128xf32> to vector<8x128xf32>
    %c0_5 = arith.constant 0 : index
    %c0_6 = arith.constant 0 : index
    %19 = vector.load %arg5[%c0_5, %c0_6] : memref<8x4xf32, #tpu.memory_space<vmem>>, vector<8x1xf32>
    %c0_7 = arith.constant 0 : index
    %c1 = arith.constant 1 : index
    %20 = vector.load %arg5[%c0_7, %c1] : memref<8x4xf32, #tpu.memory_space<vmem>>, vector<8x1xf32>
    %c0_8 = arith.constant 0 : index
    %c2 = arith.constant 2 : index
    %21 = vector.load %arg5[%c0_8, %c2] : memref<8x4xf32, #tpu.memory_space<vmem>>, vector<8x1xf32>
    %22 = tpu.concatenate %19, %19, %19, %19 in 0 : vector<8x1xf32>, vector<8x1xf32>, vector<8x1xf32>, vector<8x1xf32> -> vector<32x1xf32>
    %23 = tpu.concatenate %20, %20, %20, %20 in 0 : vector<8x1xf32>, vector<8x1xf32>, vector<8x1xf32>, vector<8x1xf32> -> vector<32x1xf32>
    %24 = vector.broadcast %22 : vector<32x1xf32> to vector<32x128xf32>
    %25 = arith.mulf %17, %24 : vector<32x128xf32>
    %26 = vector.broadcast %23 : vector<32x1xf32> to vector<32x128xf32>
    %27 = arith.addf %25, %26 : vector<32x128xf32>
    %cst_9 = arith.constant 0.000000e+00 : f32
    %28 = vector.broadcast %cst_9 : f32 to vector<32x128xf32>
    %29 = arith.maximumf %27, %28 : vector<32x128xf32>
    %c1_10 = arith.constant 1 : index
    %c0_11 = arith.constant 0 : index
    %30 = vector.load %arg4[%c1_10, %c0_11] : memref<4x128xbf16, #tpu.memory_space<vmem>>, vector<1x128xbf16>
    %31 = arith.extf %30 : vector<1x128xbf16> to vector<1x128xf32>
    %c2_12 = arith.constant 2 : index
    %c0_13 = arith.constant 0 : index
    %32 = vector.load %arg4[%c2_12, %c0_13] : memref<4x128xbf16, #tpu.memory_space<vmem>>, vector<1x128xbf16>
    %33 = arith.extf %32 : vector<1x128xbf16> to vector<1x128xf32>
    %34 = arith.mulf %31, %33 : vector<1x128xf32>
    %35 = vector.broadcast %21 : vector<8x1xf32> to vector<8x128xf32>
    %36 = vector.broadcast %34 : vector<1x128xf32> to vector<8x128xf32>
    %37 = arith.mulf %35, %36 : vector<8x128xf32>
    %38 = vector.broadcast %21 : vector<8x1xf32> to vector<8x128xf32>
    %39 = vector.broadcast %31 : vector<1x128xf32> to vector<8x128xf32>
    %40 = arith.mulf %38, %39 : vector<8x128xf32>
    %41 = vector.broadcast %21 : vector<8x1xf32> to vector<8x128xf32>
    %42 = vector.broadcast %33 : vector<1x128xf32> to vector<8x128xf32>
    %43 = arith.mulf %41, %42 : vector<8x128xf32>
    %44 = vector.broadcast %21 : vector<8x1xf32> to vector<8x128xf32>
    %45 = arith.addf %44, %18 : vector<8x128xf32>
    %46 = tpu.concatenate %37, %40, %43, %45 in 0 : vector<8x128xf32>, vector<8x128xf32>, vector<8x128xf32>, vector<8x128xf32> -> vector<32x128xf32>
    %47 = arith.addf %29, %46 : vector<32x128xf32>
    %48 = arith.truncf %47 : vector<32x128xf32> to vector<32x128xbf16>
    %c0_14 = arith.constant 0 : index
    %c0_15 = arith.constant 0 : index
    %49 = vector.load %arg6[%c0_14, %c0_15] : memref<32x128xbf16, #tpu.memory_space<vmem>>, vector<32x128xbf16>
    tpu.vector_store %arg6[%c0_14, %c0_15], %48 {strides = array<i32>} : memref<32x128xbf16, #tpu.memory_space<vmem>>, vector<32x128xbf16>,
    return
  }
  func.func @transform_0(%arg0: i32) -> (i32, i32) {
    %c0_i32 = arith.constant 0 : i32
    %c0_i32_0 = arith.constant 0 : i32
    return %c0_i32, %arg0 : i32, i32
  }
  func.func @transform_1(%arg0: i32) -> (i32, i32) {
    %c1_i32 = arith.constant 1 : i32
    %0 = arith.addi %arg0, %c1_i32 : i32
    %c0_i32 = arith.constant 0 : i32
    %c0_i32_0 = arith.constant 0 : i32
    return %c0_i32, %0 : i32, i32
  }
  func.func @transform_2(%arg0: i32) -> (i32, i32) {
    %c0_i32 = arith.constant 0 : i32
    %c0_i32_0 = arith.constant 0 : i32
    %c0_i32_1 = arith.constant 0 : i32
    return %c0_i32, %c0_i32_0 : i32, i32
  }
  func.func @transform_3(%arg0: i32) -> (i32, i32) {
    %c0_i32 = arith.constant 0 : i32
    %c0_i32_0 = arith.constant 0 : i32
    return %c0_i32, %arg0 : i32, i32
  }
  func.func @transform_4(%arg0: i32) -> (i32, i32) {
    %c0_i32 = arith.constant 0 : i32
    %c0_i32_0 = arith.constant 0 : i32
    %c0_i32_1 = arith.constant 0 : i32
    return %c0_i32, %c0_i32_0 : i32, i32
  }
  func.func @transform_5(%arg0: i32) -> (i32, i32) {
    %c0_i32 = arith.constant 0 : i32
    %c0_i32_0 = arith.constant 0 : i32
    return %c0_i32, %arg0 : i32, i32
  }
}

</mosaic_0001>

<llo_original>
// kernel: residual_block_forward.2
$region0: #{residual_block_forward.2}
  #allocation0 [shape = 'u32[]', space=smem, size = 0x4, offset = 0x4, fixed_abs, tag = 'smem constant byte address 0x4 - core index']
  #allocation1 [shape = 'u32[144,128]{1,0:T(1,128)}', space=vmem, size = 0x12000, scoped, tag = 'internal scratch']
  %s0 = inlined_call_operand.vmem [shape: bf16[4,896], index: 0, kind: input, shape index: {}, may-alias: {0,1}]
  %s1 = inlined_call_operand.vmem [shape: bf16[4,896], index: 1, kind: input, shape index: {}, may-alias: {0,1}]
  %s2 = inlined_call_operand.vmem [shape: bf16[40,36], index: 2, kind: input, shape index: {}]
  %s3 = inlined_call_operand.vmem [shape: bf16[4,768], index: 3, kind: input, shape index: {}]
  %s4 = inlined_call_operand.vmem [shape: f32[6,40,2], index: 4, kind: output, shape index: {}]
  %s5 = sld [smem:[#allocation0]]
  $region49: #{residual_block_forward.2} parent=0
    _
  %s7 = ssub.s32 1, %s5
  %s8 = scalar_select 0, %s7, %s5
  loop: start=0, step=1, limit=8
  $region2: #{residual_block_forward.2} parent=0 // loop_pre_header
    _
  $region3: #{residual_block_forward.2} parent=0 // loop_header
    %s10 = sphi 0, %s14
    %p11 = scmp.ge.s32.totalorder %s10, 8
    %s20 = sphi 0, %s22
    %s23 = sphi 0, %s20
    %s24 = sphi 0, %s23
    %s40 = sphi 0, %s24
    %s48 = sphi 0, %s50
    %s51 = sphi 0, %s48
    %s52 = sphi 0, %s51
    %s68 = sphi 0, %s52
    %s72 = sphi 0, %s72
    %s74 = sphi 0, %s72
    %s75 = sphi 0, %s74
    %s89 = sphi 0, %s75
    %s95 = sphi 0, %s97
    %s98 = sphi 0, %s95
    %s99 = sphi 0, %s98
    %s115 = sphi 0, %s99
    %s121 = sphi 0, %s123
    %s124 = sphi 0, %s121
    %s125 = sphi 0, %s124
    %s141 = sphi 0, %s125
  $region4: #{residual_block_forward.2} parent=0 // loop_header_branch
    %13 = sbr.rel (%p11) target = $region8
  $region5: #{residual_block_forward.2} parent=0 // loop_body
    %s15 = ssub.s32 %s10, 1
    %s16 = ssub.s32 %s10, 2
    %s17 = sadd.s32 %s10, 1
    %s18 = ssub.s32 %s10, %s17
    %p19 = scmp.eq.s32.totalorder %s18, 0
    %s21 = sadd.s32 %s20, 1
    %s22 = scalar_select %p19, %s20, %s21
    %p25 = pneg %p19
    %p26 = scmp.eq.s32.totalorder %s10, 5
    %p27 = por %p25, %p26
    %p28 = scmp.ne.s32.totalorder %s20, %s23
    %p29 = scmp.eq.s32.totalorder %s10, 0
    %p30 = por %p28, %p29
    %p31 = scmp.ne.s32.totalorder %s20, %s23
    %p32 = scmp.eq.s32.totalorder %s15, 5
    %p33 = por %p31, %p32
    %p34 = scmp.ne.s32.totalorder %s23, %s24
    %p35 = scmp.eq.s32.totalorder %s15, 0
    %p36 = por %p34, %p35
    %p37 = scmp.ne.s32.totalorder %s23, %s24
    %p38 = scmp.eq.s32.totalorder %s16, 5
    %p39 = por %p37, %p38
    %p41 = scmp.ne.s32.totalorder %s24, %s40
    %p42 = scmp.eq.s32.totalorder %s16, 0
    %p43 = por %p41, %p42
    %s44 = sadd.s32 %s10, 1
    %s45 = sadd.s32 %s17, 1
    %s46 = ssub.s32 %s44, %s45
    %p47 = scmp.eq.s32.totalorder %s46, 0
    %s49 = sadd.s32 %s48, 1
    %s50 = scalar_select %p47, %s48, %s49
    %p53 = pneg %p47
    %p54 = scmp.eq.s32.totalorder %s10, 5
    %p55 = por %p53, %p54
    %p56 = scmp.ne.s32.totalorder %s48, %s51
    %p57 = scmp.eq.s32.totalorder %s10, 0
    %p58 = por %p56, %p57
    %p59 = scmp.ne.s32.totalorder %s48, %s51
    %p60 = scmp.eq.s32.totalorder %s15, 5
    %p61 = por %p59, %p60
    %p62 = scmp.ne.s32.totalorder %s51, %s52
    %p63 = scmp.eq.s32.totalorder %s15, 0
    %p64 = por %p62, %p63
    %p65 = scmp.ne.s32.totalorder %s51, %s52
    %p66 = scmp.eq.s32.totalorder %s16, 5
    %p67 = por %p65, %p66
    %p69 = scmp.ne.s32.totalorder %s52, %s68
    %p70 = scmp.eq.s32.totalorder %s16, 0
    %p71 = por %p69, %p70
    %s73 = sadd.s32 %s72, 1
    %p76 = scmp.eq.s32.totalorder %s10, 5
    %p77 = scmp.ne.s32.totalorder %s72, %s74
    %p78 = scmp.eq.s32.totalorder %s10, 0
    %p79 = por %p77, %p78
    %p80 = scmp.ne.s32.totalorder %s72, %s74
    %p81 = scmp.eq.s32.totalorder %s15, 5
    %p82 = por %p80, %p81
    %p83 = scmp.ne.s32.totalorder %s74, %s75
    %p84 = scmp.eq.s32.totalorder %s15, 0
    %p85 = por %p83, %p84
    %p86 = scmp.ne.s32.totalorder %s74, %s75
    %p87 = scmp.eq.s32.totalorder %s16, 5
    %p88 = por %p86, %p87
    %p90 = scmp.ne.s32.totalorder %s75, %s89
    %p91 = scmp.eq.s32.totalorder %s16, 0
    %p92 = por %p90, %p91
    %s93 = ssub.s32 %s10, %s17
    %p94 = scmp.eq.s32.totalorder %s93, 0
    %s96 = sadd.s32 %s95, 1
    %s97 = scalar_select %p94, %s95, %s96
    %p100 = pneg %p94
    %p101 = scmp.eq.s32.totalorder %s10, 5
    %p102 = por %p100, %p101
    %p103 = scmp.ne.s32.totalorder %s95, %s98
    %p104 = scmp.eq.s32.totalorder %s10, 0
    %p105 = por %p103, %p104
    %p106 = scmp.ne.s32.totalorder %s95, %s98
    %p107 = scmp.eq.s32.totalorder %s15, 5
    %p108 = por %p106, %p107
    %p109 = scmp.ne.s32.totalorder %s98, %s99
    %p110 = scmp.eq.s32.totalorder %s15, 0
    %p111 = por %p109, %p110
    %p112 = scmp.ne.s32.totalorder %s98, %s99
    %p113 = scmp.eq.s32.totalorder %s16, 5
    %p114 = por %p112, %p113
    %p116 = scmp.ne.s32.totalorder %s99, %s115
    %p117 = scmp.eq.s32.totalorder %s16, 0
    %p118 = por %p116, %p117
    %s119 = ssub.s32 %s10, %s17
    %p120 = scmp.eq.s32.totalorder %s119, 0
    %s122 = sadd.s32 %s121, 1
    %s123 = scalar_select %p120, %s121, %s122
    %p126 = pneg %p120
    %p127 = scmp.eq.s32.totalorder %s10, 5
    %p128 = por %p126, %p127
    %p129 = scmp.ne.s32.totalorder %s121, %s124
    %p130 = scmp.eq.s32.totalorder %s10, 0
    %p131 = por %p129, %p130
    %p132 = scmp.ne.s32.totalorder %s121, %s124
    %p133 = scmp.eq.s32.totalorder %s15, 5
    %p134 = por %p132, %p133
    %p135 = scmp.ne.s32.totalorder %s124, %s125
    %p136 = scmp.eq.s32.totalorder %s15, 0
    %p137 = por %p135, %p136
    %p138 = scmp.ne.s32.totalorder %s124, %s125
    %p139 = scmp.eq.s32.totalorder %s16, 5
    %p140 = por %p138, %p139
    %p142 = scmp.ne.s32.totalorder %s125, %s141
    %p143 = scmp.eq.s32.totalorder %s16, 0
    %p144 = por %p142, %p143
    %p145 = scmp.le.s32.totalorder 1, %s10
    %p146 = scmp.lt.s32.totalorder %s10, 7
    %p147 = pnand %p145, %p146
    %p148 = pneg %p147
    // Predicated region
    $region9: #{residual_block_forward.2} parent=5 // pred_check
      _
    $region10: #{residual_block_forward.2} parent=5 // pred_check_branch
      %150 = sbr.rel (%p147) target = $region12
    $region11: #{residual_block_forward.2} parent=5 // pred_region
      %s151 = ssub.s32 %s10, 1
      // Predicated region
      $region13: #{residual_block_forward.2} parent=11 // pred_check
        %p152 = pneg %p85
      $region14: #{residual_block_forward.2} parent=11 // pred_check_branch
        %154 = sbr.rel (%p152) target = $region16
      $region15: #{residual_block_forward.2} parent=11 // pred_region
        _
      $region16: #{residual_block_forward.2} parent=11 // pred_fallthru
        _
    $region12: #{residual_block_forward.2} parent=5 // pred_fallthru
      _
    %p155 = scmp.lt.s32.totalorder %s10, 6
    // Predicated region
    $region17: #{residual_block_forward.2} parent=5 // pred_check
      %p156 = pneg %p155
    $region18: #{residual_block_forward.2} parent=5 // pred_check_branch
      %158 = sbr.rel (%p156) target = $region20
    $region19: #{residual_block_forward.2} parent=5 // pred_region
      // Predicated region
      $region21: #{residual_block_forward.2} parent=19 // pred_check
        %p159 = pneg %p30
      $region22: #{residual_block_forward.2} parent=19 // pred_check_branch
        %161 = sbr.rel (%p159) target = $region24
      $region23: #{residual_block_forward.2} parent=19 // pred_region
        %p162 = scmp.lt.s32.totalorder %s10, 6
        %s163 = scalar_select %p162, %s10, 6
        %s164 = smul.addr %s163, 2
        %s165 = scalar_lea.vmem %s0, %s164
      $region24: #{residual_block_forward.2} parent=19 // pred_fallthru
        _
      // Predicated region
      $region25: #{residual_block_forward.2} parent=19 // pred_check
        %p166 = pneg %p58
      $region26: #{residual_block_forward.2} parent=19 // pred_check_branch
        %168 = sbr.rel (%p166) target = $region28
      $region27: #{residual_block_forward.2} parent=19 // pred_region
        %s169 = sadd.s32 %s10, 1
        %p170 = scmp.lt.s32.totalorder %s169, 6
        %s171 = scalar_select %p170, %s169, 6
        %s172 = smul.addr %s171, 2
        %s173 = scalar_lea.vmem %s1, %s172
        %s174 = sadd.s32 %s10, 1
      $region28: #{residual_block_forward.2} parent=19 // pred_fallthru
        _
      // Predicated region
      $region29: #{residual_block_forward.2} parent=19 // pred_check
        %p175 = pneg %p105
      $region30: #{residual_block_forward.2} parent=19 // pred_check_branch
        %177 = sbr.rel (%p175) target = $region32
      $region31: #{residual_block_forward.2} parent=19 // pred_region
        %p178 = scmp.lt.s32.totalorder %s10, 5
        %s179 = scalar_select %p178, %s10, 5
        %s180 = smul.addr %s179, 2
        %s181 = scalar_lea.vmem %s3, %s180
      $region32: #{residual_block_forward.2} parent=19 // pred_fallthru
        _
    $region20: #{residual_block_forward.2} parent=5 // pred_fallthru
      _
    %p182 = scmp.le.s32.totalorder 1, %s10
    %p183 = scmp.lt.s32.totalorder %s10, 7
    %p184 = pnand %p182, %p183
    %p185 = pneg %p184
    // Predicated region
    $region33: #{residual_block_forward.2} parent=5 // pred_check
      _
    $region34: #{residual_block_forward.2} parent=5 // pred_check_branch
      %187 = sbr.rel (%p184) target = $region36
    $region35: #{residual_block_forward.2} parent=5 // pred_region
      %s188 = ssub.s32 %s10, 1
      %p189 = scmp.lt.s32.totalorder %s15, 6
      %s190 = scalar_select %p189, %s15, 6
      %s191 = smul.addr %s190, 2
      %s192 = scalar_lea.vmem %s0, %s191
      %p193 = pneg %p36
      %p194 = pneg %p33
      %s195 = sadd.s32 %s15, 1
      %p196 = scmp.lt.s32.totalorder %s195, 6
      %s197 = scalar_select %p196, %s195, 6
      %s198 = smul.addr %s197, 2
      %s199 = scalar_lea.vmem %s1, %s198
      %p200 = pneg %p64
      %p201 = pneg %p61
      %p202 = pneg %p85
      %p203 = pneg %p82
      %p204 = scmp.lt.s32.totalorder %s15, 5
      %s205 = scalar_select %p204, %s15, 5
      %s206 = smul.addr %s205, 2
      %s207 = scalar_lea.vmem %s3, %s206
      %p208 = pneg %p111
      %p209 = pneg %p108
      %p210 = pneg %p137
      %p211 = pneg %p134
      %p212 = scmp.lt.s32.totalorder %s15, 5
      %s213 = scalar_select %p212, %s15, 5
      %s214 = smul.addr %s213, 5
      %s215 = smul.addr %s214, 8
      %s216 = scalar_lea.vmem %s4, %s215
      %p217 = scmp.lt.s32.totalorder %s15, 6
      %s218 = scalar_select %p217, %s15, 6
      %s219 = smul.addr %s218, 2
      %s220 = scalar_lea.vmem %s0, %s219
      %s221 = sadd.s32 %s15, 1
      %p222 = scmp.lt.s32.totalorder %s221, 6
      %s223 = scalar_select %p222, %s221, 6
      %s224 = smul.addr %s223, 2
      %s225 = scalar_lea.vmem %s1, %s224
      %s226 = sadd.s32 %s15, 1
      %p227 = scmp.lt.s32.totalorder %s15, 5
      %s228 = scalar_select %p227, %s15, 5
      %s229 = smul.addr %s228, 2
      %s230 = scalar_lea.vmem %s3, %s229
      %p231 = scmp.lt.s32.totalorder %s15, 5
      %s232 = scalar_select %p231, %s15, 5
      %s233 = smul.addr %s232, 5
      %s234 = smul.addr %s233, 8
      %s235 = scalar_lea.vmem %s4, %s234
      %v237 = vld [vmem:[%s220] sm:$0x3]
      %v238 = vld [vmem:[%s225] sm:$0x3]
      %v239 = vunpack.c.l.bf16 %v237
      %v240 = vunpack.c.l.bf16 %v238
      %v243 = vrot.slane %v239, 4
      %v244 = vrot.slane %v240, 4
      %245 = vrot.lane.b32.xlu0 %v243, 127
      %v246 = vpop.permute.xlu0 %245
      %247 = vrot.lane.b32.xlu0 %v244, 127
      %v248 = vpop.permute.xlu0 %247
      %vm249 = vcmask 1039360
      %v250 = vsel %vm249, %v246, %v248
      %252 = vrot.lane.b32.xlu0 %v239, 126
      %v253 = vpop.permute.xlu0 %252
      %254 = vrot.lane.b32.xlu0 %v240, 126
      %v255 = vpop.permute.xlu0 %254
      %vm256 = vcmask 1031168
      %v257 = vsel %vm256, %v253, %v255
      %259 = vrot.lane.b32.xlu0 %v243, 110
      %v260 = vpop.permute.xlu0 %259
      %261 = vrot.lane.b32.xlu0 %v244, 110
      %v262 = vpop.permute.xlu0 %261
      %vm263 = vcmask 900096
      %v264 = vsel %vm263, %v260, %v262
      %266 = vrot.lane.b32.xlu0 %v239, 109
      %v267 = vpop.permute.xlu0 %266
      %268 = vrot.lane.b32.xlu0 %v240, 109
      %v269 = vpop.permute.xlu0 %268
      %vm270 = vcmask 891904
      %v271 = vsel %vm270, %v267, %v269
      %273 = vrot.lane.b32.xlu0 %v243, 108
      %v274 = vpop.permute.xlu0 %273
      %275 = vrot.lane.b32.xlu0 %v244, 108
      %v276 = vpop.permute.xlu0 %275
      %vm277 = vcmask 883712
      %v278 = vsel %vm277, %v274, %v276
      %280 = vrot.lane.b32.xlu0 %v239, 92
      %v281 = vpop.permute.xlu0 %280
      %282 = vrot.lane.b32.xlu0 %v240, 92
      %v283 = vpop.permute.xlu0 %282
      %vm284 = vcmask 752640
      %v285 = vsel %vm284, %v281, %v283
      %287 = vrot.lane.b32.xlu0 %v243, 91
      %v288 = vpop.permute.xlu0 %287
      %289 = vrot.lane.b32.xlu0 %v244, 91
      %v290 = vpop.permute.xlu0 %289
      %vm291 = vcmask 744448
      %v292 = vsel %vm291, %v288, %v290
      %294 = vrot.lane.b32.xlu0 %v239, 90
      %v295 = vpop.permute.xlu0 %294
      %296 = vrot.lane.b32.xlu0 %v240, 90
      %v297 = vpop.permute.xlu0 %296
      %vm298 = vcmask 736256
      %v299 = vsel %vm298, %v295, %v297
      %vm301 = vcmask 1043456
      %v302 = vsel %vm301, %v239, %v250
      %v303 = vsel %vm301, %v257, %v264
      %v304 = vsel %vm301, %v271, %v278
      %v305 = vsel %vm301, %v285, %v292
      %v306 = vpack.c.bf16 %v303, %v302
      %v307 = vpack.c.bf16 %v305, %v304
      %v308 = vpack.c.bf16 %v299, %v299
      %v309 = vld [vmem:[%s2] sm:$0xf]
      %v310 = vld [vmem:[%s2 + $0x4] sm:$0xf]
      %v311 = vld [vmem:[%s2 + $0x8] sm:$0xf]
      %v312 = vld [vmem:[%s2 + $0xc] sm:$0xf]
      %v313 = vld [vmem:[%s2 + $0x10] sm:$0xf]
      %v319 = vunpack.c.l.b16 %v309
      %v320 = vunpack.c.l.b16 %v310
      %v321 = vunpack.c.l.b16 %v311
      %v322 = vunpack.c.l.b16 %v312
      %v323 = vunpack.c.l.b16 %v313
      %v324 = vpack.c.b16 %v320, %v319
      %v325 = vpack.c.b16 %v322, %v321
      %v326 = vpack.c.b16 %v323, %v323
      %vm327 = vcmask 293888
      %v329 = vsel %vm327, %v324, 0
      %v332 = vsel %vm327, %v325, 0
      %v335 = vsel %vm327, %v326, 0
      %vm337 = vcmask 1041408
      %v339 = vsel %vm337, %v308, 0
      %341 = vmatprep.subr.bf16.mxu0 0
      %342 = vmatpush1.bf16.msra.mxu0 %v306
      %343 = vmatprep.subr.bf16.mxu0 0
      %344 = vmatpush1.bf16.msra.mxu0 %v307
      %345 = vmatprep.subr.bf16.mxu0 0
      %346 = vmatpush1.bf16.msra.mxu0 %v339
      %347 = vmatprep.subr.bf16.mxu0 0
      %348 = vmatpush1.bf16.msra.mxu0 0
      %349 = vmatprep.subr.bf16.mxu0 0
      %350 = vmatpush1.bf16.msra.mxu0 0
      %351 = vmatprep.subr.bf16.mxu0 0
      %352 = vmatpush1.bf16.msra.mxu0 0
      %353 = vmatprep.subr.bf16.mxu0 0
      %354 = vmatpush1.bf16.msra.mxu0 0
      %355 = vmatprep.subr.bf16.mxu0 0
      %356 = vmatpush1.bf16.msra.mxu0 0
      %357 = vmatprep.subr.bf16.mxu0 0
      %358 = vmatpush1.bf16.msra.mxu0 0
      %359 = vmatprep.subr.bf16.mxu0 0
      %360 = vmatpush1.bf16.msra.mxu0 0
      %361 = vmatprep.subr.bf16.mxu0 0
      %362 = vmatpush1.bf16.msra.mxu0 0
      %363 = vmatprep.subr.bf16.mxu0 0
      %364 = vmatpush1.bf16.msra.mxu0 0
      %365 = vmatprep.subr.bf16.mxu0 0
      %366 = vmatpush1.bf16.msra.mxu0 0
      %367 = vmatprep.subr.bf16.mxu0 0
      %368 = vmatpush1.bf16.msra.mxu0 0
      %369 = vmatprep.subr.bf16.mxu0 0
      %370 = vmatpush1.bf16.msra.mxu0 0
      %371 = vmatprep.subr.bf16.mxu0 0
      %372 = vmatpush1.bf16.msra.mxu0 0
      %373 = vmatprep.mubr.bf16.mxu0 0
      %374 = vmatmul.mubr.bf16.gmra.mrb[0].mxu0 %v329
      %v375 = vpop.f32.mrb[0].mxu0
      %v376 = vadd.f32 0.0, %v375
      %v377 = vpop.f32.mrb[0].mxu0
      %v378 = vpop.f32.mrb[0].mxu0
      %v379 = vadd.f32 0.0, %v378
      %v380 = vpop.f32.mrb[0].mxu0
      %381 = vmatprep.mubr.bf16.mxu0 0
      %382 = vmatmul.mubr.bf16.gmra.mrb[0].mxu0 %v332
      %v383 = vpop.f32.mrb[0].mxu0
      %v384 = vadd.f32 0.0, %v383
      %v385 = vpop.f32.mrb[0].mxu0
      %v386 = vpop.f32.mrb[0].mxu0
      %v387 = vadd.f32 0.0, %v386
      %v388 = vpop.f32.mrb[0].mxu0
      %389 = vmatprep.mubr.bf16.mxu0 0
      %390 = vmatmul.mubr.bf16.gmra.mrb[0].mxu0 %v335
      %v391 = vpop.f32.mrb[0].mxu0
      %v392 = vadd.f32 0.0, %v391
      %v393 = vpop.f32.mrb[0].mxu0
      %v394 = vpop.f32.mrb[0].mxu0
      %v395 = vpop.f32.mrb[0].mxu0
      %396 = vdwg.mxu0
      %v397 = vld [vmem:[%s230] sm:$0x1]
      %v398 = vunpack.c.l.bf16 %v397
      %v399 = vlaneseq
      %v400 = vshrl.u32 %v399, 7
      %v401 = vsub.s32 0, %v400
      %v402 = vrot.slane %v398, %v401
      %v403 = vmul.f32 %v376, %v402
      %v404 = vmul.f32 %v379, %v402
      %v405 = vmul.f32 %v384, %v402
      %v406 = vmul.f32 %v387, %v402
      %v407 = vmul.f32 %v392, %v402
      %408 = vadd.xlane.f32.xlu0 %v403
      %v409 = vpop.xlane.xlu0 %408
      %410 = vadd.xlane.f32.xlu0 %v404
      %v411 = vpop.xlane.xlu0 %410
      %412 = vadd.xlane.f32.xlu0 %v405
      %v413 = vpop.xlane.xlu0 %412
      %414 = vadd.xlane.f32.xlu0 %v406
      %v415 = vpop.xlane.xlu0 %414
      %416 = vadd.xlane.f32.xlu0 %v407
      %v417 = vpop.xlane.xlu0 %416
      %v418 = vmul.f32 %v403, %v403
      %v419 = vmul.f32 %v404, %v404
      %v420 = vmul.f32 %v405, %v405
      %v421 = vmul.f32 %v406, %v406
      %v422 = vmul.f32 %v407, %v407
      %423 = vadd.xlane.f32.xlu0 %v418
      %v424 = vpop.xlane.xlu0 %423
      %425 = vadd.xlane.f32.xlu0 %v419
      %v426 = vpop.xlane.xlu0 %425
      %427 = vadd.xlane.f32.xlu0 %v420
      %v428 = vpop.xlane.xlu0 %427
      %429 = vadd.xlane.f32.xlu0 %v421
      %v430 = vpop.xlane.xlu0 %429
      %431 = vadd.xlane.f32.xlu0 %v422
      %v432 = vpop.xlane.xlu0 %431
      %vm433 = vcmask 7168
      %v434 = vsel %vm433, %v409, %v424
      %v435 = vsel %vm433, %v411, %v426
      %v436 = vsel %vm433, %v413, %v428
      %v437 = vsel %vm433, %v415, %v430
      %v438 = vsel %vm433, %v417, %v432
      %vm439 = vcmask 15360
      %440 = vst.msk [vmem:[%s235] sm:$0xff] %vm439, %v434
      %441 = vst.msk [vmem:[%s235 + $0x8] sm:$0xff] %vm439, %v435
      %442 = vst.msk [vmem:[%s235 + $0x10] sm:$0xff] %vm439, %v436
      %443 = vst.msk [vmem:[%s235 + $0x18] sm:$0xff] %vm439, %v437
      %444 = vst.msk [vmem:[%s235 + $0x20] sm:$0xff] %vm439, %v438
      %p445 = scmp.lt.s32.totalorder %s15, 5
      %s446 = scalar_select %p445, %s15, 5
      %s447 = smul.addr %s446, 5
      %s448 = smul.addr %s447, 8
      %s449 = scalar_lea.vmem %s4, %s448
      // Predicated region
      $region37: #{residual_block_forward.2} parent=35 // pred_check
        %p450 = pneg %p134
      $region38: #{residual_block_forward.2} parent=35 // pred_check_branch
        %452 = sbr.rel (%p450) target = $region40
      $region39: #{residual_block_forward.2} parent=35 // pred_region
        _
      $region40: #{residual_block_forward.2} parent=35 // pred_fallthru
        _
    $region36: #{residual_block_forward.2} parent=5 // pred_fallthru
      _
    %p453 = scmp.le.s32.totalorder 2, %s10
    // Predicated region
    $region41: #{residual_block_forward.2} parent=5 // pred_check
      %p454 = pneg %p453
    $region42: #{residual_block_forward.2} parent=5 // pred_check_branch
      %456 = sbr.rel (%p454) target = $region44
    $region43: #{residual_block_forward.2} parent=5 // pred_region
      %s457 = ssub.s32 %s10, 2
      // Predicated region
      $region45: #{residual_block_forward.2} parent=43 // pred_check
        %p458 = pneg %p140
      $region46: #{residual_block_forward.2} parent=43 // pred_check_branch
        %460 = sbr.rel (%p458) target = $region48
      $region47: #{residual_block_forward.2} parent=43 // pred_region
        %p461 = scmp.lt.s32.totalorder %s16, 5
        %s462 = scalar_select %p461, %s16, 5
        %s463 = smul.addr %s462, 5
        %s464 = smul.addr %s463, 8
        %s465 = scalar_lea.vmem %s4, %s464
      $region48: #{residual_block_forward.2} parent=43 // pred_fallthru
        _
    $region44: #{residual_block_forward.2} parent=5 // pred_fallthru
      _
  $region6: #{residual_block_forward.2} parent=0 // loop_footer
    %s14 = sadd.s32 1, %s10
  $region7: #{residual_block_forward.2} parent=0 // loop_footer_branch
    %9 = sbr.rel target = $region3
  $region8: #{residual_block_forward.2} parent=0 // loop_exit
    _

// kernel: residual_block_forward.3
$region0: #{residual_block_forward.3}
  #allocation0 [shape = 'u32[]', space=smem, size = 0x4, offset = 0x4, fixed_abs, tag = 'smem constant byte address 0x4 - core index']
  #allocation1 [shape = 'u32[144,128]{1,0:T(1,128)}', space=vmem, size = 0x12000, scoped, tag = 'internal scratch']
  %s0 = inlined_call_operand.vmem [shape: bf16[4,896], index: 0, kind: input, shape index: {}, may-alias: {0,1}]
  %s1 = inlined_call_operand.vmem [shape: bf16[4,896], index: 1, kind: input, shape index: {}, may-alias: {0,1}]
  %s2 = inlined_call_operand.vmem [shape: bf16[40,36], index: 2, kind: input, shape index: {}]
  %s3 = inlined_call_operand.vmem [shape: bf16[4,768], index: 3, kind: input, shape index: {}]
  %s4 = inlined_call_operand.vmem [shape: f32[8,4], index: 4, kind: input, shape index: {}]
  %s5 = inlined_call_operand.vmem [shape: bf16[32,768], index: 5, kind: output, shape index: {}]
  %s6 = sld [smem:[#allocation0]]
  $region90: #{residual_block_forward.3} parent=0
    _
  %s8 = ssub.s32 1, %s6
  %s9 = scalar_select 0, %s8, %s6
  $region1: #{residual_block_forward.3} parent=0
    #allocation2 [shape = 'u8[16384]{0}', space=vmem, size = 0x4000, scoped, tag = 'output window, operand 0']
    loop: start=0, step=1, limit=8
    $region2: #{residual_block_forward.3} parent=1 // loop_pre_header
      _
    $region3: #{residual_block_forward.3} parent=1 // loop_header
      %s11 = sphi 0, %s15
      %p12 = scmp.ge.s32.totalorder %s11, 8
      %s21 = sphi 0, %s23
      %s24 = sphi 0, %s21
      %s25 = sphi 0, %s24
      %s41 = sphi 0, %s25
      %s49 = sphi 0, %s51
      %s52 = sphi 0, %s49
      %s53 = sphi 0, %s52
      %s69 = sphi 0, %s53
      %s73 = sphi 0, %s73
      %s75 = sphi 0, %s73
      %s76 = sphi 0, %s75
      %s90 = sphi 0, %s76
      %s96 = sphi 0, %s98
      %s99 = sphi 0, %s96
      %s100 = sphi 0, %s99
      %s116 = sphi 0, %s100
      %s120 = sphi 0, %s120
      %s122 = sphi 0, %s120
      %s123 = sphi 0, %s122
      %s137 = sphi 0, %s123
      %s143 = sphi 0, %s145
      %s146 = sphi 0, %s143
      %s147 = sphi 0, %s146
      %s163 = sphi 0, %s147
    $region4: #{residual_block_forward.3} parent=1 // loop_header_branch
      %14 = sbr.rel (%p12) target = $region8
    $region5: #{residual_block_forward.3} parent=1 // loop_body
      %s16 = ssub.s32 %s11, 1
      %s17 = ssub.s32 %s11, 2
      %s18 = sadd.s32 %s11, 1
      %s19 = ssub.s32 %s11, %s18
      %p20 = scmp.eq.s32.totalorder %s19, 0
      %s22 = sadd.s32 %s21, 1
      %s23 = scalar_select %p20, %s21, %s22
      %p26 = pneg %p20
      %p27 = scmp.eq.s32.totalorder %s11, 5
      %p28 = por %p26, %p27
      %p29 = scmp.ne.s32.totalorder %s21, %s24
      %p30 = scmp.eq.s32.totalorder %s11, 0
      %p31 = por %p29, %p30
      %p32 = scmp.ne.s32.totalorder %s21, %s24
      %p33 = scmp.eq.s32.totalorder %s16, 5
      %p34 = por %p32, %p33
      %p35 = scmp.ne.s32.totalorder %s24, %s25
      %p36 = scmp.eq.s32.totalorder %s16, 0
      %p37 = por %p35, %p36
      %p38 = scmp.ne.s32.totalorder %s24, %s25
      %p39 = scmp.eq.s32.totalorder %s17, 5
      %p40 = por %p38, %p39
      %p42 = scmp.ne.s32.totalorder %s25, %s41
      %p43 = scmp.eq.s32.totalorder %s17, 0
      %p44 = por %p42, %p43
      %s45 = sadd.s32 %s11, 1
      %s46 = sadd.s32 %s18, 1
      %s47 = ssub.s32 %s45, %s46
      %p48 = scmp.eq.s32.totalorder %s47, 0
      %s50 = sadd.s32 %s49, 1
      %s51 = scalar_select %p48, %s49, %s50
      %p54 = pneg %p48
      %p55 = scmp.eq.s32.totalorder %s11, 5
      %p56 = por %p54, %p55
      %p57 = scmp.ne.s32.totalorder %s49, %s52
      %p58 = scmp.eq.s32.totalorder %s11, 0
      %p59 = por %p57, %p58
      %p60 = scmp.ne.s32.totalorder %s49, %s52
      %p61 = scmp.eq.s32.totalorder %s16, 5
      %p62 = por %p60, %p61
      %p63 = scmp.ne.s32.totalorder %s52, %s53
      %p64 = scmp.eq.s32.totalorder %s16, 0
      %p65 = por %p63, %p64
      %p66 = scmp.ne.s32.totalorder %s52, %s53
      %p67 = scmp.eq.s32.totalorder %s17, 5
      %p68 = por %p66, %p67
      %p70 = scmp.ne.s32.totalorder %s53, %s69
      %p71 = scmp.eq.s32.totalorder %s17, 0
      %p72 = por %p70, %p71
      %s74 = sadd.s32 %s73, 1
      %p77 = scmp.eq.s32.totalorder %s11, 5
      %p78 = scmp.ne.s32.totalorder %s73, %s75
      %p79 = scmp.eq.s32.totalorder %s11, 0
      %p80 = por %p78, %p79
      %p81 = scmp.ne.s32.totalorder %s73, %s75
      %p82 = scmp.eq.s32.totalorder %s16, 5
      %p83 = por %p81, %p82
      %p84 = scmp.ne.s32.totalorder %s75, %s76
      %p85 = scmp.eq.s32.totalorder %s16, 0
      %p86 = por %p84, %p85
      %p87 = scmp.ne.s32.totalorder %s75, %s76
      %p88 = scmp.eq.s32.totalorder %s17, 5
      %p89 = por %p87, %p88
      %p91 = scmp.ne.s32.totalorder %s76, %s90
      %p92 = scmp.eq.s32.totalorder %s17, 0
      %p93 = por %p91, %p92
      %s94 = ssub.s32 %s11, %s18
      %p95 = scmp.eq.s32.totalorder %s94, 0
      %s97 = sadd.s32 %s96, 1
      %s98 = scalar_select %p95, %s96, %s97
      %p101 = pneg %p95
      %p102 = scmp.eq.s32.totalorder %s11, 5
      %p103 = por %p101, %p102
      %p104 = scmp.ne.s32.totalorder %s96, %s99
      %p105 = scmp.eq.s32.totalorder %s11, 0
      %p106 = por %p104, %p105
      %p107 = scmp.ne.s32.totalorder %s96, %s99
      %p108 = scmp.eq.s32.totalorder %s16, 5
      %p109 = por %p107, %p108
      %p110 = scmp.ne.s32.totalorder %s99, %s100
      %p111 = scmp.eq.s32.totalorder %s16, 0
      %p112 = por %p110, %p111
      %p113 = scmp.ne.s32.totalorder %s99, %s100
      %p114 = scmp.eq.s32.totalorder %s17, 5
      %p115 = por %p113, %p114
      %p117 = scmp.ne.s32.totalorder %s100, %s116
      %p118 = scmp.eq.s32.totalorder %s17, 0
      %p119 = por %p117, %p118
      %s121 = sadd.s32 %s120, 1
      %p124 = scmp.eq.s32.totalorder %s11, 5
      %p125 = scmp.ne.s32.totalorder %s120, %s122
      %p126 = scmp.eq.s32.totalorder %s11, 0
      %p127 = por %p125, %p126
      %p128 = scmp.ne.s32.totalorder %s120, %s122
      %p129 = scmp.eq.s32.totalorder %s16, 5
      %p130 = por %p128, %p129
      %p131 = scmp.ne.s32.totalorder %s122, %s123
      %p132 = scmp.eq.s32.totalorder %s16, 0
      %p133 = por %p131, %p132
      %p134 = scmp.ne.s32.totalorder %s122, %s123
      %p135 = scmp.eq.s32.totalorder %s17, 5
      %p136 = por %p134, %p135
      %p138 = scmp.ne.s32.totalorder %s123, %s137
      %p139 = scmp.eq.s32.totalorder %s17, 0
      %p140 = por %p138, %p139
      %s141 = ssub.s32 %s11, %s18
      %p142 = scmp.eq.s32.totalorder %s141, 0
      %s144 = sadd.s32 %s143, 1
      %s145 = scalar_select %p142, %s143, %s144
      %p148 = pneg %p142
      %p149 = scmp.eq.s32.totalorder %s11, 5
      %p150 = por %p148, %p149
      %p151 = scmp.ne.s32.totalorder %s143, %s146
      %p152 = scmp.eq.s32.totalorder %s11, 0
      %p153 = por %p151, %p152
      %p154 = scmp.ne.s32.totalorder %s143, %s146
      %p155 = scmp.eq.s32.totalorder %s16, 5
      %p156 = por %p154, %p155
      %p157 = scmp.ne.s32.totalorder %s146, %s147
      %p158 = scmp.eq.s32.totalorder %s16, 0
      %p159 = por %p157, %p158
      %p160 = scmp.ne.s32.totalorder %s146, %s147
      %p161 = scmp.eq.s32.totalorder %s17, 5
      %p162 = por %p160, %p161
      %p164 = scmp.ne.s32.totalorder %s147, %s163
      %p165 = scmp.eq.s32.totalorder %s17, 0
      %p166 = por %p164, %p165
      %p167 = scmp.le.s32.totalorder 1, %s11
      %p168 = scmp.lt.s32.totalorder %s11, 7
      %p169 = pnand %p167, %p168
      %p170 = pneg %p169
      // Predicated region
      $region9: #{residual_block_forward.3} parent=5 // pred_check
        _
      $region10: #{residual_block_forward.3} parent=5 // pred_check_branch
        %172 = sbr.rel (%p169) target = $region12
      $region11: #{residual_block_forward.3} parent=5 // pred_region
        %s173 = ssub.s32 %s11, 1
        // Predicated region
        $region13: #{residual_block_forward.3} parent=11 // pred_check
          %p174 = pneg %p86
        $region14: #{residual_block_forward.3} parent=11 // pred_check_branch
          %176 = sbr.rel (%p174) target = $region16
        $region15: #{residual_block_forward.3} parent=11 // pred_region
          _
        $region16: #{residual_block_forward.3} parent=11 // pred_fallthru
          _
        // Predicated region
        $region17: #{residual_block_forward.3} parent=11 // pred_check
          %p177 = pneg %p133
        $region18: #{residual_block_forward.3} parent=11 // pred_check_branch
          %179 = sbr.rel (%p177) target = $region20
        $region19: #{residual_block_forward.3} parent=11 // pred_region
          _
        $region20: #{residual_block_forward.3} parent=11 // pred_fallthru
          _
      $region12: #{residual_block_forward.3} parent=5 // pred_fallthru
        _
      %p180 = scmp.lt.s32.totalorder %s11, 6
      // Predicated region
      $region21: #{residual_block_forward.3} parent=5 // pred_check
        %p181 = pneg %p180
      $region22: #{residual_block_forward.3} parent=5 // pred_check_branch
        %183 = sbr.rel (%p181) target = $region24
      $region23: #{residual_block_forward.3} parent=5 // pred_region
        // Predicated region
        $region25: #{residual_block_forward.3} parent=23 // pred_check
          %p184 = pneg %p31
        $region26: #{residual_block_forward.3} parent=23 // pred_check_branch
          %186 = sbr.rel (%p184) target = $region28
        $region27: #{residual_block_forward.3} parent=23 // pred_region
          %p187 = scmp.lt.s32.totalorder %s11, 6
          %s188 = scalar_select %p187, %s11, 6
          %s189 = smul.addr %s188, 2
          %s190 = scalar_lea.vmem %s0, %s189
        $region28: #{residual_block_forward.3} parent=23 // pred_fallthru
          _
        // Predicated region
        $region29: #{residual_block_forward.3} parent=23 // pred_check
          %p191 = pneg %p59
        $region30: #{residual_block_forward.3} parent=23 // pred_check_branch
          %193 = sbr.rel (%p191) target = $region32
        $region31: #{residual_block_forward.3} parent=23 // pred_region
          %s194 = sadd.s32 %s11, 1
          %p195 = scmp.lt.s32.totalorder %s194, 6
          %s196 = scalar_select %p195, %s194, 6
          %s197 = smul.addr %s196, 2
          %s198 = scalar_lea.vmem %s1, %s197
          %s199 = sadd.s32 %s11, 1
        $region32: #{residual_block_forward.3} parent=23 // pred_fallthru
          _
        // Predicated region
        $region33: #{residual_block_forward.3} parent=23 // pred_check
          %p200 = pneg %p106
        $region34: #{residual_block_forward.3} parent=23 // pred_check_branch
          %202 = sbr.rel (%p200) target = $region36
        $region35: #{residual_block_forward.3} parent=23 // pred_region
          %p203 = scmp.lt.s32.totalorder %s11, 5
          %s204 = scalar_select %p203, %s11, 5
          %s205 = smul.addr %s204, 2
          %s206 = scalar_lea.vmem %s3, %s205
        $region36: #{residual_block_forward.3} parent=23 // pred_fallthru
          _
      $region24: #{residual_block_forward.3} parent=5 // pred_fallthru
        _
      %p207 = scmp.le.s32.totalorder 1, %s11
      %p208 = scmp.lt.s32.totalorder %s11, 7
      %p209 = pnand %p207, %p208
      %p210 = pneg %p209
      // Predicated region
      $region37: #{residual_block_forward.3} parent=5 // pred_check
        _
      $region38: #{residual_block_forward.3} parent=5 // pred_check_branch
        %212 = sbr.rel (%p209) target = $region40
      $region39: #{residual_block_forward.3} parent=5 // pred_region
        %s213 = ssub.s32 %s11, 1
        %p214 = scmp.lt.s32.totalorder %s16, 6
        %s215 = scalar_select %p214, %s16, 6
        %s216 = smul.addr %s215, 2
        %s217 = scalar_lea.vmem %s0, %s216
        %p218 = pneg %p37
        %p219 = pneg %p34
        %s220 = sadd.s32 %s16, 1
        %p221 = scmp.lt.s32.totalorder %s220, 6
        %s222 = scalar_select %p221, %s220, 6
        %s223 = smul.addr %s222, 2
        %s224 = scalar_lea.vmem %s1, %s223
        %p225 = pneg %p65
        %p226 = pneg %p62
        %p227 = pneg %p86
        %p228 = pneg %p83
        %p229 = scmp.lt.s32.totalorder %s16, 5
        %s230 = scalar_select %p229, %s16, 5
        %s231 = smul.addr %s230, 2
        %s232 = scalar_lea.vmem %s3, %s231
        %p233 = pneg %p112
        %p234 = pneg %p109
        %p235 = pneg %p133
        %p236 = pneg %p130
        %p237 = pneg %p159
        %p238 = pneg %p156
        %s239 = sand.u32 %s146, 1
        %s240 = sand.u32 %s146, 1
        %s241 = smul.addr %s240, 16
        %s242 = scalar_lea.vmem [#allocation2], %s241
        %p243 = scmp.lt.s32.totalorder %s16, 6
        %s244 = scalar_select %p243, %s16, 6
        %s245 = smul.addr %s244, 2
        %s246 = scalar_lea.vmem %s0, %s245
        %s247 = sadd.s32 %s16, 1
        %p248 = scmp.lt.s32.totalorder %s247, 6
        %s249 = scalar_select %p248, %s247, 6
        %s250 = smul.addr %s249, 2
        %s251 = scalar_lea.vmem %s1, %s250
        %s252 = sadd.s32 %s16, 1
        %p253 = scmp.lt.s32.totalorder %s16, 5
        %s254 = scalar_select %p253, %s16, 5
        %s255 = smul.addr %s254, 2
        %s256 = scalar_lea.vmem %s3, %s255
        %v258 = vld [vmem:[%s246] sm:$0x3]
        %v259 = vld [vmem:[%s251] sm:$0x3]
        %v260 = vunpack.c.l.bf16 %v258
        %v261 = vunpack.c.l.bf16 %v259
        %v264 = vrot.slane %v260, 4
        %v265 = vrot.slane %v261, 4
        %266 = vrot.lane.b32.xlu0 %v264, 127
        %v267 = vpop.permute.xlu0 %266
        %268 = vrot.lane.b32.xlu0 %v265, 127
        %v269 = vpop.permute.xlu0 %268
        %vm270 = vcmask 1039360
        %v271 = vsel %vm270, %v267, %v269
        %273 = vrot.lane.b32.xlu0 %v260, 126
        %v274 = vpop.permute.xlu0 %273
        %275 = vrot.lane.b32.xlu0 %v261, 126
        %v276 = vpop.permute.xlu0 %275
        %vm277 = vcmask 1031168
        %v278 = vsel %vm277, %v274, %v276
        %280 = vrot.lane.b32.xlu0 %v264, 110
        %v281 = vpop.permute.xlu0 %280
        %282 = vrot.lane.b32.xlu0 %v265, 110
        %v283 = vpop.permute.xlu0 %282
        %vm284 = vcmask 900096
        %v285 = vsel %vm284, %v281, %v283
        %287 = vrot.lane.b32.xlu0 %v260, 109
        %v288 = vpop.permute.xlu0 %287
        %289 = vrot.lane.b32.xlu0 %v261, 109
        %v290 = vpop.permute.xlu0 %289
        %vm291 = vcmask 891904
        %v292 = vsel %vm291, %v288, %v290
        %294 = vrot.lane.b32.xlu0 %v264, 108
        %v295 = vpop.permute.xlu0 %294
        %296 = vrot.lane.b32.xlu0 %v265, 108
        %v297 = vpop.permute.xlu0 %296
        %vm298 = vcmask 883712
        %v299 = vsel %vm298, %v295, %v297
        %301 = vrot.lane.b32.xlu0 %v260, 92
        %v302 = vpop.permute.xlu0 %301
        %303 = vrot.lane.b32.xlu0 %v261, 92
        %v304 = vpop.permute.xlu0 %303
        %vm305 = vcmask 752640
        %v306 = vsel %vm305, %v302, %v304
        %308 = vrot.lane.b32.xlu0 %v264, 91
        %v309 = vpop.permute.xlu0 %308
        %310 = vrot.lane.b32.xlu0 %v265, 91
        %v311 = vpop.permute.xlu0 %310
        %vm312 = vcmask 744448
        %v313 = vsel %vm312, %v309, %v311
        %315 = vrot.lane.b32.xlu0 %v260, 90
        %v316 = vpop.permute.xlu0 %315
        %317 = vrot.lane.b32.xlu0 %v261, 90
        %v318 = vpop.permute.xlu0 %317
        %vm319 = vcmask 736256
        %v320 = vsel %vm319, %v316, %v318
        %vm322 = vcmask 1043456
        %v323 = vsel %vm322, %v260, %v271
        %v324 = vsel %vm322, %v278, %v285
        %v325 = vsel %vm322, %v292, %v299
        %v326 = vsel %vm322, %v306, %v313
        %v327 = vpack.c.bf16 %v324, %v323
        %v328 = vpack.c.bf16 %v326, %v325
        %v329 = vpack.c.bf16 %v320, %v320
        %v330 = vld [vmem:[%s2] sm:$0xf]
        %v331 = vld [vmem:[%s2 + $0x4] sm:$0xf]
        %v332 = vld [vmem:[%s2 + $0x8] sm:$0xf]
        %v333 = vld [vmem:[%s2 + $0xc] sm:$0xf]
        %v334 = vld [vmem:[%s2 + $0x10] sm:$0xf]
        %v340 = vunpack.c.l.b16 %v330
        %v341 = vunpack.c.l.b16 %v331
        %v342 = vunpack.c.l.b16 %v332
        %v343 = vunpack.c.l.b16 %v333
        %v344 = vunpack.c.l.b16 %v334
        %v345 = vpack.c.b16 %v341, %v340
        %v346 = vpack.c.b16 %v343, %v342
        %v347 = vpack.c.b16 %v344, %v344
        %vm348 = vcmask 293888
        %v350 = vsel %vm348, %v345, 0
        %v353 = vsel %vm348, %v346, 0
        %v356 = vsel %vm348, %v347, 0
        %vm358 = vcmask 1041408
        %v360 = vsel %vm358, %v329, 0
        %362 = vmatprep.subr.bf16.mxu0 0
        %363 = vmatpush1.bf16.msra.mxu0 %v327
        %364 = vmatprep.subr.bf16.mxu0 0
        %365 = vmatpush1.bf16.msra.mxu0 %v328
        %366 = vmatprep.subr.bf16.mxu0 0
        %367 = vmatpush1.bf16.msra.mxu0 %v360
        %368 = vmatprep.subr.bf16.mxu0 0
        %369 = vmatpush1.bf16.msra.mxu0 0
        %370 = vmatprep.subr.bf16.mxu0 0
        %371 = vmatpush1.bf16.msra.mxu0 0
        %372 = vmatprep.subr.bf16.mxu0 0
        %373 = vmatpush1.bf16.msra.mxu0 0
        %374 = vmatprep.subr.bf16.mxu0 0
        %375 = vmatpush1.bf16.msra.mxu0 0
        %376 = vmatprep.subr.bf16.mxu0 0
        %377 = vmatpush1.bf16.msra.mxu0 0
        %378 = vmatprep.subr.bf16.mxu0 0
        %379 = vmatpush1.bf16.msra.mxu0 0
        %380 = vmatprep.subr.bf16.mxu0 0
        %381 = vmatpush1.bf16.msra.mxu0 0
        %382 = vmatprep.subr.bf16.mxu0 0
        %383 = vmatpush1.bf16.msra.mxu0 0
        %384 = vmatprep.subr.bf16.mxu0 0
        %385 = vmatpush1.bf16.msra.mxu0 0
        %386 = vmatprep.subr.bf16.mxu0 0
        %387 = vmatpush1.bf16.msra.mxu0 0
        %388 = vmatprep.subr.bf16.mxu0 0
        %389 = vmatpush1.bf16.msra.mxu0 0
        %390 = vmatprep.subr.bf16.mxu0 0
        %391 = vmatpush1.bf16.msra.mxu0 0
        %392 = vmatprep.subr.bf16.mxu0 0
        %393 = vmatpush1.bf16.msra.mxu0 0
        %394 = vmatprep.mubr.bf16.mxu0 0
        %395 = vmatmul.mubr.bf16.gmra.mrb[0].mxu0 %v350
        %v396 = vpop.f32.mrb[0].mxu0
        %v397 = vadd.f32 0.0, %v396
        %v398 = vpop.f32.mrb[0].mxu0
        %v399 = vpop.f32.mrb[0].mxu0
        %v400 = vadd.f32 0.0, %v399
        %v401 = vpop.f32.mrb[0].mxu0
        %402 = vmatprep.mubr.bf16.mxu0 0
        %403 = vmatmul.mubr.bf16.gmra.mrb[0].mxu0 %v353
        %v404 = vpop.f32.mrb[0].mxu0
        %v405 = vadd.f32 0.0, %v404
        %v406 = vpop.f32.mrb[0].mxu0
        %v407 = vpop.f32.mrb[0].mxu0
        %v408 = vadd.f32 0.0, %v407
        %v409 = vpop.f32.mrb[0].mxu0
        %410 = vmatprep.mubr.bf16.mxu0 0
        %411 = vmatmul.mubr.bf16.gmra.mrb[0].mxu0 %v356
        %v412 = vpop.f32.mrb[0].mxu0
        %v413 = vadd.f32 0.0, %v412
        %v414 = vpop.f32.mrb[0].mxu0
        %v415 = vpop.f32.mrb[0].mxu0
        %v416 = vpop.f32.mrb[0].mxu0
        %417 = vdwg.mxu0
        %v418 = vld [vmem:[%s4] sm:$0xff]
        %420 = vset.pattern.permute.xlu0 0
        %421 = vperm.xlu0 %420, %v418
        %v422 = vpop.permute.xlu0 %421
        %v424 = vmul.f32 %v397, %v422
        %v425 = vmul.f32 %v400, %v422
        %v426 = vmul.f32 %v405, %v422
        %v427 = vmul.f32 %v408, %v422
        %428 = vset.pattern.permute.xlu0 1
        %429 = vperm.xlu0 %428, %v418
        %v430 = vpop.permute.xlu0 %429
        %v432 = vadd.f32 %v424, %v430
        %v433 = vadd.f32 %v425, %v430
        %v434 = vadd.f32 %v426, %v430
        %v435 = vadd.f32 %v427, %v430
        %v436 = vmax.f32 %v432, 0.0
        %v437 = vmax.f32 %v433, 0.0
        %v438 = vmax.f32 %v434, 0.0
        %v439 = vmax.f32 %v435, 0.0
        %v440 = vld [vmem:[%s256] sm:$0x1]
        %v441 = vunpack.c.l.bf16 %v440
        %v442 = vld [vmem:[%s256] sm:$0x2]
        %v443 = vunpack.c.l.bf16 %v442
        %v445 = vrot.slane %v443, 5
        %v446 = vrot.slane %v445, 4
        %v448 = vmul.f32 %v441, %v446
        %449 = vset.pattern.permute.xlu0 2
        %450 = vperm.xlu0 %449, %v418
        %v451 = vpop.permute.xlu0 %450
        %v453 = vlaneseq
        %v454 = vshrl.u32 %v453, 7
        %v455 = vsub.s32 1, %v454
        %v456 = vrot.slane %v448, %v455
        %v457 = vmul.f32 %v451, %v456
        %v458 = vlaneseq
        %v459 = vshrl.u32 %v458, 7
        %v460 = vsub.s32 1, %v459
        %v461 = vrot.slane %v441, %v460
        %v462 = vmul.f32 %v451, %v461
        %v463 = vlaneseq
        %v464 = vshrl.u32 %v463, 7
        %v465 = vsub.s32 2, %v464
        %v466 = vrot.slane %v443, %v465
        %v467 = vmul.f32 %v451, %v466
        %v468 = vadd.f32 %v451, %v413
        %v469 = vadd.f32 %v436, %v457
        %v470 = vadd.f32 %v437, %v462
        %v471 = vadd.f32 %v438, %v467
        %v472 = vadd.f32 %v439, %v468
        %v473 = vpack.c.bf16 %v470, %v469
        %v474 = vpack.c.bf16 %v472, %v471
        %v477 = vunpack.c.l.b16 %v473
        %v478 = vunpack.c.h.b16 %v473
        %v479 = vunpack.c.l.b16 %v474
        %v480 = vunpack.c.h.b16 %v474
        %v481 = vpack.c.b16 %v477, %v477
        %v482 = vpack.c.b16 %v478, %v478
        %v483 = vpack.c.b16 %v479, %v479
        %v484 = vpack.c.b16 %v480, %v480
        %489 = vst [vmem:[%s242] sm:$0xf] %v481
        %490 = vst [vmem:[%s242 + $0x4] sm:$0xf] %v482
        %491 = vst [vmem:[%s242 + $0x8] sm:$0xf] %v483
        %492 = vst [vmem:[%s242 + $0xc] sm:$0xf] %v484
        %s493 = sand.u32 %s146, 1
        %s494 = sand.u32 %s146, 1
        %s495 = smul.addr %s494, 16
        %s496 = scalar_lea.vmem [#allocation2], %s495
        // Predicated region
        $region41: #{residual_block_forward.3} parent=39 // pred_check
          %p497 = pneg %p156
        $region42: #{residual_block_forward.3} parent=39 // pred_check_branch
          %499 = sbr.rel (%p497) target = $region44
        $region43: #{residual_block_forward.3} parent=39 // pred_region
          %s500 = smul.addr %s16, 4
          %s501 = scalar_lea.vmem %s5, %s500
          // Predicated region
          $region45: #{residual_block_forward.3} parent=43 // pred_check
            _
          $region46: #{residual_block_forward.3} parent=43 // pred_check_branch
            %503 = sbr.rel (0) target = $region48
          $region47: #{residual_block_forward.3} parent=43 // pred_region
            // Predicated region
            $region49: #{residual_block_forward.3} parent=47 // pred_check
              _
            $region50: #{residual_block_forward.3} parent=47 // pred_check_branch
              %505 = sbr.rel target = $region52
            $region51: #{residual_block_forward.3} parent=47 // pred_region
              // Predicated region
              $region64: #{residual_block_forward.3} parent=51 // pred_check
                _
              $region65: #{residual_block_forward.3} parent=51 // pred_check_branch
                %526 = sbr.rel (0) target = $region67
              $region66: #{residual_block_forward.3} parent=51 // pred_region
                loop: start=0, step=1, limit=1
                $region68: #{residual_block_forward.3} parent=66 // loop_pre_header
                  _
                $region69: #{residual_block_forward.3} parent=66 // loop_header
                  %s528 = sphi 0, %s532
                  %p529 = scmp.ge.s32.totalorder %s528, 1
                  %s533 = sphi %s496, %s496
                  %s534 = sphi %s501, %s501
                $region70: #{residual_block_forward.3} parent=66 // loop_header_branch
                  %531 = sbr.rel (%p529) target = $region74
                $region71: #{residual_block_forward.3} parent=66 // loop_body
                  _
                $region72: #{residual_block_forward.3} parent=66 // loop_footer
                  %s532 = sadd.s32 1, %s528
                $region73: #{residual_block_forward.3} parent=66 // loop_footer_branch
                  %527 = sbr.rel target = $region69
                $region74: #{residual_block_forward.3} parent=66 // loop_exit
                  _
                loop: start=0, step=1, limit=1
                $region75: #{residual_block_forward.3} parent=66 // loop_pre_header
                  _
                $region76: #{residual_block_forward.3} parent=66 // loop_header
                  %s537 = sphi 0, %s541
                  %p538 = scmp.ge.s32.totalorder %s537, 1
                  %s542 = sphi %s496, %s496
                  %s543 = sphi %s501, %s501
                $region77: #{residual_block_forward.3} parent=66 // loop_header_branch
                  %540 = sbr.rel (%p538) target = $region81
                $region78: #{residual_block_forward.3} parent=66 // loop_body
                  %v544 = vld [vmem:[%s542] sm:$0xf]
                  %545 = vst [vmem:[%s543] sm:$0xf] %v544
                  %v546 = vld [vmem:[%s542 + $0x4] sm:$0xf]
                  %547 = vst [vmem:[%s543 + $0x18] sm:$0xf] %v546
                  %v548 = vld [vmem:[%s542 + $0x8] sm:$0xf]
                  %549 = vst [vmem:[%s543 + $0x30] sm:$0xf] %v548
                  %v550 = vld [vmem:[%s542 + $0xc] sm:$0xf]
                  %551 = vst [vmem:[%s543 + $0x48] sm:$0xf] %v550
                $region79: #{residual_block_forward.3} parent=66 // loop_footer
                  %s541 = sadd.s32 1, %s537
                $region80: #{residual_block_forward.3} parent=66 // loop_footer_branch
                  %536 = sbr.rel target = $region76
                $region81: #{residual_block_forward.3} parent=66 // loop_exit
                  _
              $region67: #{residual_block_forward.3} parent=51 // pred_fallthru
                _
            $region52: #{residual_block_forward.3} parent=47 // pred_fallthru
              _
            // Predicated region
            $region53: #{residual_block_forward.3} parent=47 // pred_check
              _
            $region54: #{residual_block_forward.3} parent=47 // pred_check_branch
              %507 = sbr.rel (0) target = $region56
            $region55: #{residual_block_forward.3} parent=47 // pred_region
              loop: start=0, step=1, limit=1
              $region57: #{residual_block_forward.3} parent=55 // loop_pre_header
                _
              $region58: #{residual_block_forward.3} parent=55 // loop_header
                %s510 = sphi 0, %s514
                %p511 = scmp.ge.s32.totalorder %s510, 1
                %s515 = sphi %s496, %s496
                %s516 = sphi %s501, %s501
              $region59: #{residual_block_forward.3} parent=55 // loop_header_branch
                %513 = sbr.rel (%p511) target = $region63
              $region60: #{residual_block_forward.3} parent=55 // loop_body
                %v517 = vld [vmem:[%s515] sm:$0xf]
                %518 = vst [vmem:[%s516] sm:$0xf] %v517
                %v519 = vld [vmem:[%s515 + $0x4] sm:$0xf]
                %520 = vst [vmem:[%s516 + $0x18] sm:$0xf] %v519
                %v521 = vld [vmem:[%s515 + $0x8] sm:$0xf]
                %522 = vst [vmem:[%s516 + $0x30] sm:$0xf] %v521
                %v523 = vld [vmem:[%s515 + $0xc] sm:$0xf]
                %524 = vst [vmem:[%s516 + $0x48] sm:$0xf] %v523
              $region61: #{residual_block_forward.3} parent=55 // loop_footer
                %s514 = sadd.s32 1, %s510
              $region62: #{residual_block_forward.3} parent=55 // loop_footer_branch
                %509 = sbr.rel target = $region58
              $region63: #{residual_block_forward.3} parent=55 // loop_exit
                _
            $region56: #{residual_block_forward.3} parent=47 // pred_fallthru
              _
          $region48: #{residual_block_forward.3} parent=43 // pred_fallthru
            _
          %552 = vnop
        $region44: #{residual_block_forward.3} parent=39 // pred_fallthru
          _
      $region40: #{residual_block_forward.3} parent=5 // pred_fallthru
        _
      %p553 = scmp.le.s32.totalorder 2, %s11
      // Predicated region
      $region82: #{residual_block_forward.3} parent=5 // pred_check
        %p554 = pneg %p553
      $region83: #{residual_block_forward.3} parent=5 // pred_check_branch
        %556 = sbr.rel (%p554) target = $region85
      $region84: #{residual_block_forward.3} parent=5 // pred_region
        %s557 = ssub.s32 %s11, 2
        // Predicated region
        $region86: #{residual_block_forward.3} parent=84 // pred_check
          %p558 = pneg %p162
        $region87: #{residual_block_forward.3} parent=84 // pred_check_branch
          %560 = sbr.rel (%p558) target = $region89
        $region88: #{residual_block_forward.3} parent=84 // pred_region
          %s561 = sand.u32 %s147, 1
          %s562 = sand.u32 %s147, 1
          %s563 = smul.addr %s562, 16
          %s564 = scalar_lea.vmem [#allocation2], %s563
        $region89: #{residual_block_forward.3} parent=84 // pred_fallthru
          _
      $region85: #{residual_block_forward.3} parent=5 // pred_fallthru
        _
    $region6: #{residual_block_forward.3} parent=1 // loop_footer
      %s15 = sadd.s32 1, %s11
    $region7: #{residual_block_forward.3} parent=1 // loop_footer_branch
      %10 = sbr.rel target = $region3
    $region8: #{residual_block_forward.3} parent=1 // loop_exit
      _

</llo_original>
